<compile_context>
chip_gen: v5e
topology: v5e:2x2
jax: 0.10.0
libtpu: 0.0.40
codegen_flags: <defaults>
</compile_context>

<pallas_src>
import functools
import math

import numpy as np
import jax
import jax.numpy as jnp
from jax.experimental import pallas as pl
from jax.experimental.pallas import tpu as pltpu


def _cdiv(a, b):
    return -(-a // b)


def _round_up(a, b):
    return _cdiv(a, b) * b


def compute_ranks_tt(tt_shapes, ratio):
    param = np.prod(tt_shapes)
    d = len(tt_shapes)
    c = param / ratio
    if d == 2:
        r = int(param / (ratio * sum(tt_shapes)))
        return [1, r, 1]
    b = tt_shapes[0] + tt_shapes[-1]
    a = sum(tt_shapes[1:-1])
    r_avg = int((math.sqrt(b * b + 4 * a * c) - b) / (2 * a))
    tt_ranks = [r_avg] * (d - 1)
    tt_ranks = [1] + tt_ranks + [1]
    return list(tt_ranks)


# ---------------------------------------------------------------------------
# One-time parameter preparation (hoisted out of the forward path)
# ---------------------------------------------------------------------------
def prepare_tt_embedding_params(cores, input_tt_shape, output_tt_shape,
                                tt_ranks, mxu_dtype=None):
    """Re-layout the TT cores once per parameter update.

    Produces:
      * bd: block-diagonal matrix of the "head" cores 0..k-2, each as
        (r_i * r_{i+1}, S_i_pad), so the per-sample gather of ALL head cores
        is one MXU matmul against a stacked one-hot.
      * gl: last input core with the contracted output cores W_out folded in,
        flattened to (r_{k-1} * S_last_pad, output_size).
    """
    k = len(input_tt_shape)
    p = len(output_tt_shape)
    assert k >= 2, "need at least two input TT factors"
    assert len(tt_ranks) == k + p + 1
    assert tt_ranks[0] == 1 and tt_ranks[-1] == 1, (
        "canonical TT decomposition requires boundary ranks of 1")
    output_size = int(np.prod(output_tt_shape))
    param_dtype = cores[0].dtype
    mxu_dtype = jnp.dtype(mxu_dtype) if mxu_dtype is not None else jnp.dtype(jnp.float32)

    # Mixed-radix factors (same order as the torch module).
    factors = [input_tt_shape[-1]]
    for i in range(k - 2, 0, -1):
        factors.append(input_tt_shape[i] * factors[len(input_tt_shape) - 2 - i])
    factors.reverse()

    # ---- head cores 0..k-2 -> block diagonal (sum R_i, sum S_i_pad) ----------
    head_mats, head_row_off, head_spad = [], [], []
    roff = 0
    for i in range(k - 1):
        s = int(input_tt_shape[i])
        spad = _round_up(s, 8)
        m = jnp.transpose(cores[i], (0, 2, 1)).reshape(
            tt_ranks[i] * tt_ranks[i + 1], s).astype(jnp.float32)
        m = jnp.pad(m, ((0, 0), (0, spad - s)))
        head_mats.append(m)
        head_row_off.append(roff)
        head_spad.append(spad)
        roff += tt_ranks[i] * tt_ranks[i + 1]
    r_pad = _round_up(roff, 8)
    s_head = int(sum(head_spad))
    bd = jnp.zeros((r_pad, s_head), jnp.float32)
    r0, c0 = 0, 0
    for m in head_mats:
        bd = bd.at[r0:r0 + m.shape[0], c0:c0 + m.shape[1]].set(m)
        r0 += m.shape[0]
        c0 += m.shape[1]

    # ---- contract the output TT cores into W_out (r_k, output_size) ----------
    w = cores[k].reshape(tt_ranks[k] * output_tt_shape[0],
                         tt_ranks[k + 1]).astype(jnp.float32)
    for j in range(1, p):
        c = cores[k + j].reshape(
            tt_ranks[k + j], output_tt_shape[j] * tt_ranks[k + j + 1]).astype(jnp.float32)
        w = (w @ c).reshape(-1, tt_ranks[k + j + 1])
    w_out = w.reshape(tt_ranks[k], output_size)

    # ---- fold W_out into the last input core: G'[a, s, :] ---------------------
    s_last = int(input_tt_shape[k - 1])
    s_last_pad = _round_up(s_last, 8)
    g_last = jnp.einsum('asb,bo->aso', cores[k - 1].astype(jnp.float32), w_out)
    g_last = jnp.pad(g_last, ((0, 0), (0, s_last_pad - s_last), (0, 0)))
    gl = g_last.reshape(tt_ranks[k - 1] * s_last_pad, output_size)

    return dict(
        bd=bd.astype(mxu_dtype),
        gl=gl.astype(mxu_dtype),
        k=k,
        output_size=output_size,
        ranks=tuple(int(r) for r in tt_ranks),
        factors=tuple(int(f) for f in factors),
        head_row_off=tuple(int(x) for x in head_row_off),
        head_spad=tuple(int(x) for x in head_spad),
        s_last_pad=int(s_last_pad),
        param_dtype=param_dtype,
    )


# ---------------------------------------------------------------------------
# Kernel
# ---------------------------------------------------------------------------
def _tt_embed_kernel(idx_ref, bd_ref, gl_ref, out_ref, *,
                     bc, k, ranks, head_row_off, head_spad, s_last_pad):
    """One grid step = one (block_n, output_size) output tile.

    idx_ref: (block_n // bc, k, bc) int32   decomposed indices, lane-chunked
    bd_ref:  (R_pad, S_head)                block-diag head-core matrix
    gl_ref:  (r_{k-1} * S_last_pad, out)    last core with W_out folded in
    out_ref: (block_n, output_size)
    """
    n_chunks = idx_ref.shape[0]
    mxu_dtype = bd_ref.dtype

    # Lane-chunked inner loop: keeps gathered slabs / one-hots / the P matrix at
    # a small fixed vreg footprint regardless of block_n (vreg-pressure item in
    # the perf review), while the output tile stays one big lane-dense DMA.
    @pl.loop(0, n_chunks)
    def _(c):
        idx = idx_ref[c]                                      # (k, bc) int32

        # Stacked one-hot for all head cores -> one fused MXU gather matmul.
        parts = []
        for i in range(k - 1):
            rows = jax.lax.broadcasted_iota(jnp.int32, (head_spad[i], bc), 0)
            parts.append((rows == idx[i:i + 1, :]).astype(mxu_dtype))
        onehot = parts[0] if len(parts) == 1 else jnp.concatenate(parts, axis=0)
        g = jnp.dot(bd_ref[...], onehot,
                    preferred_element_type=jnp.float32)       # (R_pad, bc)

        # TT chain over lane-dense (rank, bc) slabs: unrolled VPU FMAs, f32.
        v = g[0:ranks[1], :]                                   # core 0 (r_0 == 1)
        for i in range(1, k - 1):
            r_prev, r_next = ranks[i], ranks[i + 1]
            gi = g[head_row_off[i]:head_row_off[i] + r_prev * r_next, :]
            acc = v[0:1, :] * gi[0:r_next, :]
            for a in range(1, r_prev):
                acc = acc + v[a:a + 1, :] * gi[a * r_next:(a + 1) * r_next, :]
            v = acc                                            # (r_next, bc)

        # Last core + output projection fused: P[(a,s), n] = v[a,n] * onehot[s,n]
        # (VPU), then out[n, :] = sum_{a,s} P[(a,s), n] * G'[(a,s), :]  (MXU with
        # contraction K = r_{k-1} * S_last_pad instead of just r_k).
        rows = jax.lax.broadcasted_iota(jnp.int32, (s_last_pad, bc), 0)
        oh_last = (rows == idx[k - 1:k, :]).astype(jnp.float32)
        r_prev = ranks[k - 1]
        p_mat = jnp.concatenate([v[a:a + 1, :] * oh_last for a in range(r_prev)],
                                axis=0)                        # (r_prev*S_last_pad, bc)
        # TODO(synk): verify via pl.lower_as_mlir that this lhs-transposed
        # contraction does not insert an XLU transpose of p_mat or of the result.
        out = jax.lax.dot_general(
            p_mat.astype(mxu_dtype), gl_ref[...],
            dimension_numbers=(((0,), (0,)), ((), ())),
            preferred_element_type=jnp.float32)                # (bc, output_size)

        off = pl.multiple_of(c * bc, bc)
        out_ref[pl.ds(off, bc), :] = out.astype(out_ref.dtype)


# ---------------------------------------------------------------------------
# Forward
# ---------------------------------------------------------------------------
def tt_embedding_forward(indices, params, *, block_n=4096, lane_chunk=256,
                         out_dtype=None):
    k = params['k']
    output_size = params['output_size']
    ranks = params['ranks']
    factors = params['factors']
    bd = params['bd']
    gl = params['gl']
    out_dtype = (jnp.dtype(out_dtype) if out_dtype is not None
                 else jnp.dtype(params['param_dtype']))

    input_shape = indices.shape
    flat = indices.reshape(-1).astype(jnp.int32)
    n = int(flat.shape[0])

    # ---- tile-size selection --------------------------------------------------
    bc = max(128, (int(lane_chunk) // 128) * 128)             # compute lane chunk
    bn = max(bc, (int(block_n) // bc) * bc)                   # DMA sample tile

    # VMEM budget: out/idx double-buffers + resident core matrices must fit the
    # scoped VMEM of the current generation (v7x 64 MiB vs v5e/v6e 128 MiB).
    try:
        vmem_cap = int(getattr(pltpu.get_tpu_info(), 'vmem_capacity_bytes',
                               64 << 20))
    except Exception:
        vmem_cap = 64 << 20
    out_isz = out_dtype.itemsize
    const_bytes = int(bd.nbytes) + int(gl.nbytes)
    per_sample = 2 * (output_size * out_isz + k * 4)          # double-buffered
    budget = (min(vmem_cap, 128 << 20) * 3) // 8              # ~24 MiB on v7x
    avail = max(budget - 2 * const_bytes - (2 << 20), per_sample * bc)
    bn = min(bn, max(bc, (avail // per_sample) // bc * bc))
    # Keep the sample grid >= 2 steps when the batch allows (v7x has 2 TCs).
    bn = min(bn, max(bc, _round_up(_cdiv(n, 2), bc)))

    n_pad = _round_up(n, bn)
    grid = (n_pad // bn,)
    chunks_per_block = bn // bc

    # ---- mixed-radix index decomposition (cheap glue, stays in XLA) -----------
    # TODO(synk): could move into the kernel (k int div/mods per lane chunk) if
    # the (k, N) int32 HBM round-trip ever shows up in a trace.
    if n_pad != n:
        flat = jnp.concatenate([flat, jnp.zeros((n_pad - n,), jnp.int32)])
    rem = flat
    idx_rows = []
    for f in factors:
        idx_rows.append(rem // f)
        rem = rem % f
    idx_rows.append(rem)
    idx = jnp.stack(idx_rows, axis=0)                         # (k, n_pad)
    idx = idx.reshape(k, n_pad // bc, bc).transpose(1, 0, 2)  # (n_chunks, k, bc)

    # ---- pallas call -----------------------------------------------------------
    # TODO(synk): pipeline_mode=pl.Buffered(1) on the constant-index core specs
    # would stop double-buffering them in VMEM (matters for large ranks on v7x).
    in_specs = [
        pl.BlockSpec((chunks_per_block, k, bc), lambda g: (g, 0, 0)),
        pl.BlockSpec(bd.shape, lambda g: (0, 0)),
        pl.BlockSpec(gl.shape, lambda g: (0, 0)),
    ]
    out_spec = pl.BlockSpec((bn, output_size), lambda g: (g, 0))

    est_vmem = (2 * (bn * k * 4 + bn * output_size * out_isz + const_bytes)
                + (4 << 20))
    vmem_limit = int(min(max(vmem_cap - (2 << 20), 16 << 20),
                         max(32 << 20, est_vmem)))

    kernel = functools.partial(
        _tt_embed_kernel,
        bc=bc, k=k, ranks=ranks,
        head_row_off=params['head_row_off'],
        head_spad=params['head_spad'],
        s_last_pad=params['s_last_pad'])

    out = pl.pallas_call(
        kernel,
        out_shape=jax.ShapeDtypeStruct((n_pad, output_size), out_dtype),
        grid_spec=pltpu.PrefetchScalarGridSpec(
            num_scalar_prefetch=0,
            grid=grid,
            in_specs=in_specs,
            out_specs=out_spec),
        compiler_params=pltpu.CompilerParams(
            dimension_semantics=("parallel",),
            vmem_limit_bytes=vmem_limit),
    )(idx, bd, gl)

    out = out[:n]
    return out.reshape(tuple(input_shape) + (output_size,))


# ---------------------------------------------------------------------------
# Pure-JAX reference: reconstruct full embedding table (tt2ten) and gather.
# ---------------------------------------------------------------------------
def tt_embedding_reference(indices, cores, input_tt_shape, output_tt_shape,
                           tt_ranks):
    t = cores[0].reshape(-1, tt_ranks[1])
    for i in range(1, len(cores)):
        r = tt_ranks[i]
        t = t.reshape(-1, r) @ cores[i].reshape(r, -1)
    vocab = int(np.prod(input_tt_shape))
    out_size = int(np.prod(output_tt_shape))
    table = t.reshape(vocab, out_size)
    out = table[indices.reshape(-1)]
    return out.reshape(tuple(indices.shape) + (out_size,))


if __name__ == "__main__":
    # Small, module-consistent configuration.
    input_tt_shape = [8, 6, 5]      # vocab = 240
    output_tt_shape = [8, 16]       # output_size = 128
    tt_ranks = [1, 8, 8, 8, 8, 1]
    tt_shapes = input_tt_shape + output_tt_shape

    # Deterministic xavier_uniform-style init of the TT cores.
    key = jax.random.PRNGKey(0)
    cores = []
    for i in range(len(tt_shapes)):
        shape = (tt_ranks[i], tt_shapes[i], tt_ranks[i + 1])
        fan_in = shape[1] * shape[2]
        fan_out = shape[0] * shape[2]
        bound = math.sqrt(6.0 / (fan_in + fan_out))
        key, sub = jax.random.split(key)
        cores.append(jax.random.uniform(sub, shape, jnp.float32, -bound, bound))

    key, sub = jax.random.split(key)
    vocab = int(np.prod(input_tt_shape))
    indices = jax.random.randint(sub, (2, 8), 0, vocab, dtype=jnp.int32)

    # One-time parameter prep, then the Pallas forward.
    params = prepare_tt_embedding_params(cores, input_tt_shape,
                                         output_tt_shape, tt_ranks)
    out = tt_embedding_forward(indices, params)
    out = jax.block_until_ready(out)

    ref = tt_embedding_reference(indices, cores, input_tt_shape,
                                 output_tt_shape, tt_ranks)
    assert out.shape == (2, 8, int(np.prod(output_tt_shape))), out.shape
    np.testing.assert_allclose(np.asarray(out), np.asarray(ref),
                               rtol=1e-4, atol=1e-5)
    print("KERNEL_OK")
</pallas_src>

<mosaic_0001>
module attributes {stable_mosaic.version = 11 : i64} {
  func.func @_tt_embed_kernel(%arg0: i32, %arg1: memref<1x3x256xi32, #tpu.memory_space<vmem>>, %arg2: memref<72x16xf32, #tpu.memory_space<vmem>>, %arg3: memref<64x128xf32, #tpu.memory_space<vmem>>, %arg4: memref<256x128xf32, #tpu.memory_space<vmem>>) attributes {dimension_semantics = [#tpu.dimension_semantics<parallel>], iteration_bounds = array<i64: 1>, scalar_prefetch = 0 : i64, scratch_operands = 0 : i64, tpu.core_type = #tpu.core_type<tc>, window_params = [{transform_indices = @transform_0, window_bounds = array<i64: 1, 3, 256>}, {pipeline_mode = #tpu.pipeline_mode<synchronous>, transform_indices = @transform_1, window_bounds = array<i64: 72, 16>}, {pipeline_mode = #tpu.pipeline_mode<synchronous>, transform_indices = @transform_2, window_bounds = array<i64: 64, 128>}, {transform_indices = @transform_3, window_bounds = array<i64: 256, 128>}]} {
    %c0_i32 = arith.constant 0 : i32
    %c1_i32 = arith.constant 1 : i32
    %0 = arith.muli %c0_i32, %c1_i32 : i32
    %c0_i32_0 = arith.constant 0 : i32
    %1 = arith.addi %c0_i32_0, %0 : i32
    %2 = arith.index_cast %1 : i32 to index
    %c0 = arith.constant 0 : index
    %c0_1 = arith.constant 0 : index
    %3 = vector.load %arg1[%2, %c0, %c0_1] : memref<1x3x256xi32, #tpu.memory_space<vmem>>, vector<1x3x256xi32>
    %4 = vector.shape_cast %3 : vector<1x3x256xi32> to vector<3x256xi32>
    %5 = tpu.iota {dimensions = array<i32: 0>} : vector<8x256xi32>
    %6 = vector.extract_strided_slice %4 {offsets = [0, 0], sizes = [1, 256], strides = [1, 1]} : vector<3x256xi32> to vector<1x256xi32>
    %7 = vector.broadcast %6 : vector<1x256xi32> to vector<8x256xi32>
    %8 = arith.cmpi eq, %5, %7 : vector<8x256xi32>
    %9 = arith.extui %8 : vector<8x256xi1> to vector<8x256xi32>
    %10 = arith.sitofp %9 : vector<8x256xi32> to vector<8x256xf32>
    %11 = tpu.iota {dimensions = array<i32: 0>} : vector<8x256xi32>
    %12 = vector.extract_strided_slice %4 {offsets = [1, 0], sizes = [1, 256], strides = [1, 1]} : vector<3x256xi32> to vector<1x256xi32>
    %13 = vector.broadcast %12 : vector<1x256xi32> to vector<8x256xi32>
    %14 = arith.cmpi eq, %11, %13 : vector<8x256xi32>
    %15 = arith.extui %14 : vector<8x256xi1> to vector<8x256xi32>
    %16 = arith.sitofp %15 : vector<8x256xi32> to vector<8x256xf32>
    %17 = tpu.concatenate %10, %16 in 0 : vector<8x256xf32>, vector<8x256xf32> -> vector<16x256xf32>
    %c0_2 = arith.constant 0 : index
    %c0_3 = arith.constant 0 : index
    %18 = vector.load %arg2[%c0_2, %c0_3] : memref<72x16xf32, #tpu.memory_space<vmem>>, vector<72x16xf32>
    %cst = arith.constant dense<0.000000e+00> : vector<72x256xf32>
    %19 = tpu.matmul %18, %17, %cst {dimension_numbers = #tpu.dot_dimension_numbers<[1], [0], [0], [1], [0, 0, 1, 1], [], []>} : vector<72x16xf32>, vector<16x256xf32>, vector<72x256xf32> -> vector<72x256xf32>
    %20 = vector.extract_strided_slice %19 {offsets = [0, 0], sizes = [8, 256], strides = [1, 1]} : vector<72x256xf32> to vector<8x256xf32>
    %21 = vector.extract_strided_slice %19 {offsets = [8, 0], sizes = [64, 256], strides = [1, 1]} : vector<72x256xf32> to vector<64x256xf32>
    %22 = vector.extract_strided_slice %20 {offsets = [0, 0], sizes = [1, 256], strides = [1, 1]} : vector<8x256xf32> to vector<1x256xf32>
    %23 = vector.extract_strided_slice %21 {offsets = [0, 0], sizes = [8, 256], strides = [1, 1]} : vector<64x256xf32> to vector<8x256xf32>
    %24 = vector.broadcast %22 : vector<1x256xf32> to vector<8x256xf32>
    %25 = arith.mulf %24, %23 : vector<8x256xf32>
    %26 = vector.extract_strided_slice %20 {offsets = [1, 0], sizes = [1, 256], strides = [1, 1]} : vector<8x256xf32> to vector<1x256xf32>
    %27 = vector.extract_strided_slice %21 {offsets = [8, 0], sizes = [8, 256], strides = [1, 1]} : vector<64x256xf32> to vector<8x256xf32>
    %28 = vector.broadcast %26 : vector<1x256xf32> to vector<8x256xf32>
    %29 = arith.mulf %28, %27 : vector<8x256xf32>
    %30 = arith.addf %25, %29 : vector<8x256xf32>
    %31 = vector.extract_strided_slice %20 {offsets = [2, 0], sizes = [1, 256], strides = [1, 1]} : vector<8x256xf32> to vector<1x256xf32>
    %32 = vector.extract_strided_slice %21 {offsets = [16, 0], sizes = [8, 256], strides = [1, 1]} : vector<64x256xf32> to vector<8x256xf32>
    %33 = vector.broadcast %31 : vector<1x256xf32> to vector<8x256xf32>
    %34 = arith.mulf %33, %32 : vector<8x256xf32>
    %35 = arith.addf %30, %34 : vector<8x256xf32>
    %36 = vector.extract_strided_slice %20 {offsets = [3, 0], sizes = [1, 256], strides = [1, 1]} : vector<8x256xf32> to vector<1x256xf32>
    %37 = vector.extract_strided_slice %21 {offsets = [24, 0], sizes = [8, 256], strides = [1, 1]} : vector<64x256xf32> to vector<8x256xf32>
    %38 = vector.broadcast %36 : vector<1x256xf32> to vector<8x256xf32>
    %39 = arith.mulf %38, %37 : vector<8x256xf32>
    %40 = arith.addf %35, %39 : vector<8x256xf32>
    %41 = vector.extract_strided_slice %20 {offsets = [4, 0], sizes = [1, 256], strides = [1, 1]} : vector<8x256xf32> to vector<1x256xf32>
    %42 = vector.extract_strided_slice %21 {offsets = [32, 0], sizes = [8, 256], strides = [1, 1]} : vector<64x256xf32> to vector<8x256xf32>
    %43 = vector.broadcast %41 : vector<1x256xf32> to vector<8x256xf32>
    %44 = arith.mulf %43, %42 : vector<8x256xf32>
    %45 = arith.addf %40, %44 : vector<8x256xf32>
    %46 = vector.extract_strided_slice %20 {offsets = [5, 0], sizes = [1, 256], strides = [1, 1]} : vector<8x256xf32> to vector<1x256xf32>
    %47 = vector.extract_strided_slice %21 {offsets = [40, 0], sizes = [8, 256], strides = [1, 1]} : vector<64x256xf32> to vector<8x256xf32>
    %48 = vector.broadcast %46 : vector<1x256xf32> to vector<8x256xf32>
    %49 = arith.mulf %48, %47 : vector<8x256xf32>
    %50 = arith.addf %45, %49 : vector<8x256xf32>
    %51 = vector.extract_strided_slice %20 {offsets = [6, 0], sizes = [1, 256], strides = [1, 1]} : vector<8x256xf32> to vector<1x256xf32>
    %52 = vector.extract_strided_slice %21 {offsets = [48, 0], sizes = [8, 256], strides = [1, 1]} : vector<64x256xf32> to vector<8x256xf32>
    %53 = vector.broadcast %51 : vector<1x256xf32> to vector<8x256xf32>
    %54 = arith.mulf %53, %52 : vector<8x256xf32>
    %55 = arith.addf %50, %54 : vector<8x256xf32>
    %56 = vector.extract_strided_slice %20 {offsets = [7, 0], sizes = [1, 256], strides = [1, 1]} : vector<8x256xf32> to vector<1x256xf32>
    %57 = vector.extract_strided_slice %21 {offsets = [56, 0], sizes = [8, 256], strides = [1, 1]} : vector<64x256xf32> to vector<8x256xf32>
    %58 = vector.broadcast %56 : vector<1x256xf32> to vector<8x256xf32>
    %59 = arith.mulf %58, %57 : vector<8x256xf32>
    %60 = arith.addf %55, %59 : vector<8x256xf32>
    %61 = tpu.iota {dimensions = array<i32: 0>} : vector<8x256xi32>
    %62 = vector.extract_strided_slice %4 {offsets = [2, 0], sizes = [1, 256], strides = [1, 1]} : vector<3x256xi32> to vector<1x256xi32>
    %63 = vector.broadcast %62 : vector<1x256xi32> to vector<8x256xi32>
    %64 = arith.cmpi eq, %61, %63 : vector<8x256xi32>
    %65 = arith.extui %64 : vector<8x256xi1> to vector<8x256xi32>
    %66 = arith.sitofp %65 : vector<8x256xi32> to vector<8x256xf32>
    %67 = vector.extract_strided_slice %60 {offsets = [0, 0], sizes = [1, 256], strides = [1, 1]} : vector<8x256xf32> to vector<1x256xf32>
    %68 = vector.broadcast %67 : vector<1x256xf32> to vector<8x256xf32>
    %69 = arith.mulf %68, %66 : vector<8x256xf32>
    %70 = vector.extract_strided_slice %60 {offsets = [1, 0], sizes = [1, 256], strides = [1, 1]} : vector<8x256xf32> to vector<1x256xf32>
    %71 = vector.broadcast %70 : vector<1x256xf32> to vector<8x256xf32>
    %72 = arith.mulf %71, %66 : vector<8x256xf32>
    %73 = vector.extract_strided_slice %60 {offsets = [2, 0], sizes = [1, 256], strides = [1, 1]} : vector<8x256xf32> to vector<1x256xf32>
    %74 = vector.broadcast %73 : vector<1x256xf32> to vector<8x256xf32>
    %75 = arith.mulf %74, %66 : vector<8x256xf32>
    %76 = vector.extract_strided_slice %60 {offsets = [3, 0], sizes = [1, 256], strides = [1, 1]} : vector<8x256xf32> to vector<1x256xf32>
    %77 = vector.broadcast %76 : vector<1x256xf32> to vector<8x256xf32>
    %78 = arith.mulf %77, %66 : vector<8x256xf32>
    %79 = vector.extract_strided_slice %60 {offsets = [4, 0], sizes = [1, 256], strides = [1, 1]} : vector<8x256xf32> to vector<1x256xf32>
    %80 = vector.broadcast %79 : vector<1x256xf32> to vector<8x256xf32>
    %81 = arith.mulf %80, %66 : vector<8x256xf32>
    %82 = vector.extract_strided_slice %60 {offsets = [5, 0], sizes = [1, 256], strides = [1, 1]} : vector<8x256xf32> to vector<1x256xf32>
    %83 = vector.broadcast %82 : vector<1x256xf32> to vector<8x256xf32>
    %84 = arith.mulf %83, %66 : vector<8x256xf32>
    %85 = vector.extract_strided_slice %60 {offsets = [6, 0], sizes = [1, 256], strides = [1, 1]} : vector<8x256xf32> to vector<1x256xf32>
    %86 = vector.broadcast %85 : vector<1x256xf32> to vector<8x256xf32>
    %87 = arith.mulf %86, %66 : vector<8x256xf32>
    %88 = vector.extract_strided_slice %60 {offsets = [7, 0], sizes = [1, 256], strides = [1, 1]} : vector<8x256xf32> to vector<1x256xf32>
    %89 = vector.broadcast %88 : vector<1x256xf32> to vector<8x256xf32>
    %90 = arith.mulf %89, %66 : vector<8x256xf32>
    %91 = tpu.concatenate %69, %72, %75, %78, %81, %84, %87, %90 in 0 : vector<8x256xf32>, vector<8x256xf32>, vector<8x256xf32>, vector<8x256xf32>, vector<8x256xf32>, vector<8x256xf32>, vector<8x256xf32>, vector<8x256xf32> -> vector<64x256xf32>
    %c0_4 = arith.constant 0 : index
    %c0_5 = arith.constant 0 : index
    %92 = vector.load %arg3[%c0_4, %c0_5] : memref<64x128xf32, #tpu.memory_space<vmem>>, vector<64x128xf32>
    %cst_6 = arith.constant dense<0.000000e+00> : vector<256x128xf32>
    %93 = tpu.matmul %91, %92, %cst_6 {dimension_numbers = #tpu.dot_dimension_numbers<[0], [0], [1], [1], [0, 1, 1, 1], [], []>} : vector<64x256xf32>, vector<64x128xf32>, vector<256x128xf32> -> vector<256x128xf32>
    %c256_i32 = arith.constant 256 : i32
    %94 = arith.muli %1, %c256_i32 : i32
    %95 = tpu.assume_multiple %94, 256 : i32
    %96 = arith.index_cast %95 : i32 to index
    %c0_7 = arith.constant 0 : index
    %97 = vector.load %arg4[%96, %c0_7] : memref<256x128xf32, #tpu.memory_space<vmem>>, vector<256x128xf32>
    tpu.vector_store %arg4[%96, %c0_7], %93 {strides = array<i32>} : memref<256x128xf32, #tpu.memory_space<vmem>>, vector<256x128xf32>,
    %c1_i32_8 = arith.constant 1 : i32
    return
  }
  func.func @transform_0(%arg0: i32) -> (i32, i32, i32) {
    %c0_i32 = arith.constant 0 : i32
    %c0_i32_0 = arith.constant 0 : i32
    %c0_i32_1 = arith.constant 0 : i32
    return %arg0, %c0_i32, %c0_i32_0 : i32, i32, i32
  }
  func.func @transform_1(%arg0: i32) -> (i32, i32) {
    %c0_i32 = arith.constant 0 : i32
    %c0_i32_0 = arith.constant 0 : i32
    %c0_i32_1 = arith.constant 0 : i32
    return %c0_i32, %c0_i32_0 : i32, i32
  }
  func.func @transform_2(%arg0: i32) -> (i32, i32) {
    %c0_i32 = arith.constant 0 : i32
    %c0_i32_0 = arith.constant 0 : i32
    %c0_i32_1 = arith.constant 0 : i32
    return %c0_i32, %c0_i32_0 : i32, i32
  }
  func.func @transform_3(%arg0: i32) -> (i32, i32) {
    %c0_i32 = arith.constant 0 : i32
    %c0_i32_0 = arith.constant 0 : i32
    return %arg0, %c0_i32 : i32, i32
  }
}

</mosaic_0001>

<llo_original>
// kernel: tpu_custom_call.1
$region0: #{tpu_custom_call.1}
  #allocation0 [shape = 'u32[]', space=smem, size = 0x4, offset = 0x4, fixed_abs, tag = 'smem constant byte address 0x4 - core index']
  #allocation1 [shape = 'u32[72,128]{1,0:T(1,128)}', space=vmem, size = 0x9000, scoped, tag = 'internal scratch']
  %s0 = inlined_call_operand.vmem [shape: s32[1,3,256], index: 0, kind: input, shape index: {}]
  %s1 = inlined_call_operand.vmem [shape: f32[72,16], index: 1, kind: input, shape index: {}]
  %s2 = inlined_call_operand.vmem [shape: f32[64,128], index: 2, kind: input, shape index: {}]
  %s3 = inlined_call_operand.hbm [shape: f32[256,128], index: 3, kind: output, shape index: {}]
  %s4 = sld [smem:[#allocation0]]
  $region22: #{tpu_custom_call.1} parent=0
    _
  %s6 = ssub.s32 1, %s4
  %s7 = scalar_select 0, %s6, %s4
  $region1: #{tpu_custom_call.1} parent=0
    #allocation2 [shape = 'u8[131072]{0}', space=vmem, size = 0x20000, scoped, tag = 'output window, operand 0, single buffered']
    #allocation3 [shape = 's32[1]{0}', space=sflag, size = 0x4, scoped, tag = 'scoped memory for tpu_custom_call.1']
    %8 = vsyncpa [#allocation3], 0
    // Predicated region
    $region2: #{tpu_custom_call.1} parent=1 // pred_check
      _
    $region3: #{tpu_custom_call.1} parent=1 // pred_check_branch
      %10 = sbr.rel (0) target = $region5
    $region4: #{tpu_custom_call.1} parent=1 // pred_region
      _
    $region5: #{tpu_custom_call.1} parent=1 // pred_fallthru
      _
    // Predicated region
    $region6: #{tpu_custom_call.1} parent=1 // pred_check
      _
    $region7: #{tpu_custom_call.1} parent=1 // pred_check_branch
      %12 = sbr.rel (0) target = $region9
    $region8: #{tpu_custom_call.1} parent=1 // pred_region
      _
    $region9: #{tpu_custom_call.1} parent=1 // pred_fallthru
      _
    // Predicated region
    $region10: #{tpu_custom_call.1} parent=1 // pred_check
      _
    $region11: #{tpu_custom_call.1} parent=1 // pred_check_branch
      %14 = sbr.rel (0) target = $region13
    $region12: #{tpu_custom_call.1} parent=1 // pred_region
      _
    $region13: #{tpu_custom_call.1} parent=1 // pred_fallthru
      _
    %v15 = vld [vmem:[%s0] sm:$0x77]
    %v16 = vlaneseq
    %v17 = vshrl.u32 %v16, 7
    %v18 = vperm.slane %v15, 0
    %v19 = vperm.slane %v15, 4
    %v20 = vperm.slane %v18, 0
    %v21 = vperm.slane %v19, 0
    %vm22 = vcmp.eq.s32.totalorder %v17, %v20
    %vm23 = vcmp.eq.s32.totalorder %v17, %v21
    %v24 = vsel %vm22, 1, 0
    %v25 = vsel %vm23, 1, 0
    %v26 = vcvt.s32.f32 %v24
    %v27 = vcvt.s32.f32 %v25
    %v28 = vperm.slane %v15, 1
    %v29 = vperm.slane %v15, 5
    %v30 = vperm.slane %v28, 1
    %v31 = vperm.slane %v29, 1
    %vm32 = vcmp.eq.s32.totalorder %v17, %v30
    %vm33 = vcmp.eq.s32.totalorder %v17, %v31
    %v34 = vsel %vm32, 1, 0
    %v35 = vsel %vm33, 1, 0
    %v36 = vcvt.s32.f32 %v34
    %v37 = vcvt.s32.f32 %v35
    %v38 = vld [vmem:[%s1] sm:$0xff]
    %v39 = vld [vmem:[%s1 + $0x8] sm:$0xff]
    %v40 = vld [vmem:[%s1 + $0x10] sm:$0xff]
    %v41 = vld [vmem:[%s1 + $0x18] sm:$0xff]
    %v42 = vld [vmem:[%s1 + $0x20] sm:$0xff]
    %v43 = vld [vmem:[%s1 + $0x28] sm:$0xff]
    %v44 = vld [vmem:[%s1 + $0x30] sm:$0xff]
    %v45 = vld [vmem:[%s1 + $0x38] sm:$0xff]
    %v46 = vld [vmem:[%s1 + $0x40] sm:$0xff]
    %vm47 = vcmask 130048
    %v49 = vsel %vm47, %v38, 0
    %v52 = vsel %vm47, %v39, 0
    %v55 = vsel %vm47, %v40, 0
    %v58 = vsel %vm47, %v41, 0
    %v61 = vsel %vm47, %v42, 0
    %v64 = vsel %vm47, %v43, 0
    %v67 = vsel %vm47, %v44, 0
    %v70 = vsel %vm47, %v45, 0
    %v73 = vsel %vm47, %v46, 0
    %75 = vmatpush.msra.mxu0 0.0
    %76 = vmatpush.msra.mxu0 0.0
    %77 = vmatpush.msra.mxu0 0.0
    %78 = vmatpush.msra.mxu0 0.0
    %79 = vmatpush.msra.mxu0 0.0
    %80 = vmatpush.msra.mxu0 0.0
    %81 = vmatpush.msra.mxu0 0.0
    %82 = vmatpush.msra.mxu0 0.0
    %83 = vmatpush.msra.mxu0 0.0
    %84 = vmatpush.msra.mxu0 0.0
    %85 = vmatpush.msra.mxu0 0.0
    %86 = vmatpush.msra.mxu0 0.0
    %87 = vmatpush.msra.mxu0 0.0
    %88 = vmatpush.msra.mxu0 0.0
    %89 = vmatpush.msra.mxu0 %v36
    %90 = vmatpush.msra.mxu0 %v26
    %91 = vmatmul.f32.gmra.mxu0 %v49
    %v92 = vpop.f32.mrf.mxu0
    %v93 = vadd.f32 0.0, %v92
    %94 = vmatmul.f32.gmra.mxu0 %v52
    %v95 = vpop.f32.mrf.mxu0
    %v96 = vadd.f32 0.0, %v95
    %97 = vmatmul.f32.gmra.mxu0 %v55
    %v98 = vpop.f32.mrf.mxu0
    %v99 = vadd.f32 0.0, %v98
    %100 = vmatmul.f32.gmra.mxu0 %v58
    %v101 = vpop.f32.mrf.mxu0
    %v102 = vadd.f32 0.0, %v101
    %103 = vmatmul.f32.gmra.mxu0 %v61
    %v104 = vpop.f32.mrf.mxu0
    %v105 = vadd.f32 0.0, %v104
    %106 = vmatmul.f32.gmra.mxu0 %v64
    %v107 = vpop.f32.mrf.mxu0
    %v108 = vadd.f32 0.0, %v107
    %109 = vmatmul.f32.gmra.mxu0 %v67
    %v110 = vpop.f32.mrf.mxu0
    %v111 = vadd.f32 0.0, %v110
    %112 = vmatmul.f32.gmra.mxu0 %v70
    %v113 = vpop.f32.mrf.mxu0
    %v114 = vadd.f32 0.0, %v113
    %115 = vmatmul.f32.gmra.mxu0 %v73
    %v116 = vpop.f32.mrf.mxu0
    %v117 = vadd.f32 0.0, %v116
    %118 = vdwg.mxu0
    %119 = vmatpush.msra.mxu0 0.0
    %120 = vmatpush.msra.mxu0 0.0
    %121 = vmatpush.msra.mxu0 0.0
    %122 = vmatpush.msra.mxu0 0.0
    %123 = vmatpush.msra.mxu0 0.0
    %124 = vmatpush.msra.mxu0 0.0
    %125 = vmatpush.msra.mxu0 0.0
    %126 = vmatpush.msra.mxu0 0.0
    %127 = vmatpush.msra.mxu0 0.0
    %128 = vmatpush.msra.mxu0 0.0
    %129 = vmatpush.msra.mxu0 0.0
    %130 = vmatpush.msra.mxu0 0.0
    %131 = vmatpush.msra.mxu0 0.0
    %132 = vmatpush.msra.mxu0 0.0
    %133 = vmatpush.msra.mxu0 %v37
    %134 = vmatpush.msra.mxu0 %v27
    %135 = vmatmul.f32.gmra.mxu0 %v49
    %v136 = vpop.f32.mrf.mxu0
    %v137 = vadd.f32 0.0, %v136
    %138 = vmatmul.f32.gmra.mxu0 %v52
    %v139 = vpop.f32.mrf.mxu0
    %v140 = vadd.f32 0.0, %v139
    %141 = vmatmul.f32.gmra.mxu0 %v55
    %v142 = vpop.f32.mrf.mxu0
    %v143 = vadd.f32 0.0, %v142
    %144 = vmatmul.f32.gmra.mxu0 %v58
    %v145 = vpop.f32.mrf.mxu0
    %v146 = vadd.f32 0.0, %v145
    %147 = vmatmul.f32.gmra.mxu0 %v61
    %v148 = vpop.f32.mrf.mxu0
    %v149 = vadd.f32 0.0, %v148
    %150 = vmatmul.f32.gmra.mxu0 %v64
    %v151 = vpop.f32.mrf.mxu0
    %v152 = vadd.f32 0.0, %v151
    %153 = vmatmul.f32.gmra.mxu0 %v67
    %v154 = vpop.f32.mrf.mxu0
    %v155 = vadd.f32 0.0, %v154
    %156 = vmatmul.f32.gmra.mxu0 %v70
    %v157 = vpop.f32.mrf.mxu0
    %v158 = vadd.f32 0.0, %v157
    %159 = vmatmul.f32.gmra.mxu0 %v73
    %v160 = vpop.f32.mrf.mxu0
    %v161 = vadd.f32 0.0, %v160
    %162 = vdwg.mxu0
    %v163 = vperm.slane %v93, 0
    %v164 = vperm.slane %v137, 0
    %v165 = vmul.f32 %v163, %v96
    %v166 = vmul.f32 %v164, %v140
    %v167 = vperm.slane %v93, 1
    %v168 = vperm.slane %v137, 1
    %v169 = vmul.f32 %v167, %v99
    %v170 = vmul.f32 %v168, %v143
    %v171 = vadd.f32 %v165, %v169
    %v172 = vadd.f32 %v166, %v170
    %v173 = vperm.slane %v93, 2
    %v174 = vperm.slane %v137, 2
    %v175 = vmul.f32 %v173, %v102
    %v176 = vmul.f32 %v174, %v146
    %v177 = vadd.f32 %v171, %v175
    %v178 = vadd.f32 %v172, %v176
    %v179 = vperm.slane %v93, 3
    %v180 = vperm.slane %v137, 3
    %v181 = vmul.f32 %v179, %v105
    %v182 = vmul.f32 %v180, %v149
    %v183 = vadd.f32 %v177, %v181
    %v184 = vadd.f32 %v178, %v182
    %v185 = vperm.slane %v93, 4
    %v186 = vperm.slane %v137, 4
    %v187 = vmul.f32 %v185, %v108
    %v188 = vmul.f32 %v186, %v152
    %v189 = vadd.f32 %v183, %v187
    %v190 = vadd.f32 %v184, %v188
    %v191 = vperm.slane %v93, 5
    %v192 = vperm.slane %v137, 5
    %v193 = vmul.f32 %v191, %v111
    %v194 = vmul.f32 %v192, %v155
    %v195 = vadd.f32 %v189, %v193
    %v196 = vadd.f32 %v190, %v194
    %v197 = vperm.slane %v93, 6
    %v198 = vperm.slane %v137, 6
    %v199 = vmul.f32 %v197, %v114
    %v200 = vmul.f32 %v198, %v158
    %v201 = vadd.f32 %v195, %v199
    %v202 = vadd.f32 %v196, %v200
    %v203 = vperm.slane %v93, 7
    %v204 = vperm.slane %v137, 7
    %v205 = vmul.f32 %v203, %v117
    %v206 = vmul.f32 %v204, %v161
    %v207 = vadd.f32 %v201, %v205
    %v208 = vadd.f32 %v202, %v206
    %v209 = vperm.slane %v15, 2
    %v210 = vperm.slane %v15, 6
    %v211 = vperm.slane %v209, 2
    %v212 = vperm.slane %v210, 2
    %vm213 = vcmp.eq.s32.totalorder %v17, %v211
    %vm214 = vcmp.eq.s32.totalorder %v17, %v212
    %v215 = vsel %vm213, 1, 0
    %v216 = vsel %vm214, 1, 0
    %v217 = vcvt.s32.f32 %v215
    %v218 = vcvt.s32.f32 %v216
    %v219 = vperm.slane %v207, 0
    %v220 = vperm.slane %v208, 0
    %v221 = vmul.f32 %v219, %v217
    %v222 = vmul.f32 %v220, %v218
    %v223 = vperm.slane %v207, 1
    %v224 = vperm.slane %v208, 1
    %v225 = vmul.f32 %v223, %v217
    %v226 = vmul.f32 %v224, %v218
    %v227 = vperm.slane %v207, 2
    %v228 = vperm.slane %v208, 2
    %v229 = vmul.f32 %v227, %v217
    %v230 = vmul.f32 %v228, %v218
    %v231 = vperm.slane %v207, 3
    %v232 = vperm.slane %v208, 3
    %v233 = vmul.f32 %v231, %v217
    %v234 = vmul.f32 %v232, %v218
    %v235 = vperm.slane %v207, 4
    %v236 = vperm.slane %v208, 4
    %v237 = vmul.f32 %v235, %v217
    %v238 = vmul.f32 %v236, %v218
    %v239 = vperm.slane %v207, 5
    %v240 = vperm.slane %v208, 5
    %v241 = vmul.f32 %v239, %v217
    %v242 = vmul.f32 %v240, %v218
    %v243 = vperm.slane %v207, 6
    %v244 = vperm.slane %v208, 6
    %v245 = vmul.f32 %v243, %v217
    %v246 = vmul.f32 %v244, %v218
    %v247 = vperm.slane %v207, 7
    %v248 = vperm.slane %v208, 7
    %v249 = vmul.f32 %v247, %v217
    %v250 = vmul.f32 %v248, %v218
    %v251 = vld [vmem:[%s2] sm:$0xff]
    %v252 = vld [vmem:[%s2 + $0x8] sm:$0xff]
    %v253 = vld [vmem:[%s2 + $0x10] sm:$0xff]
    %v254 = vld [vmem:[%s2 + $0x18] sm:$0xff]
    %v255 = vld [vmem:[%s2 + $0x20] sm:$0xff]
    %v256 = vld [vmem:[%s2 + $0x28] sm:$0xff]
    %v257 = vld [vmem:[%s2 + $0x30] sm:$0xff]
    %v258 = vld [vmem:[%s2 + $0x38] sm:$0xff]
    %259 = vxpose.xlu0.b32.start [1/16] %v221, 128
    %260 = vxpose.xlu0.b32.cont [2/16] %v225, 128
    %261 = vxpose.xlu0.b32.cont [3/16] %v229, 128
    %262 = vxpose.xlu0.b32.cont [4/16] %v233, 128
    %263 = vxpose.xlu0.b32.cont [5/16] %v237, 128
    %264 = vxpose.xlu0.b32.cont [6/16] %v241, 128
    %265 = vxpose.xlu0.b32.cont [7/16] %v245, 128
    %266 = vxpose.xlu0.b32.cont [8/16] %v249, 128
    %267 = vxpose.xlu0.b32.cont [9/16] 0.0, 128
    %268 = vxpose.xlu0.b32.cont [10/16] 0.0, 128
    %269 = vxpose.xlu0.b32.cont [11/16] 0.0, 128
    %270 = vxpose.xlu0.b32.cont [12/16] 0.0, 128
    %271 = vxpose.xlu0.b32.cont [13/16] 0.0, 128
    %272 = vxpose.xlu0.b32.cont [14/16] 0.0, 128
    %273 = vxpose.xlu0.b32.cont [15/16] 0.0, 128
    %274 = vxpose.xlu0.b32.end [16/16] 0.0, 128
    %v275 = vpop.trf.xlu0
    %v276 = vpop.trf.xlu0
    %v277 = vpop.trf.xlu0
    %v278 = vpop.trf.xlu0
    %v279 = vpop.trf.xlu0
    %v280 = vpop.trf.xlu0
    %v281 = vpop.trf.xlu0
    %v282 = vpop.trf.xlu0
    %v283 = vpop.trf.xlu0
    %v284 = vpop.trf.xlu0
    %v285 = vpop.trf.xlu0
    %v286 = vpop.trf.xlu0
    %v287 = vpop.trf.xlu0
    %v288 = vpop.trf.xlu0
    %v289 = vpop.trf.xlu0
    %v290 = vpop.trf.xlu0
    %291 = vxpose.xlu0.b32.start [1/16] %v222, 128
    %292 = vxpose.xlu0.b32.cont [2/16] %v226, 128
    %293 = vxpose.xlu0.b32.cont [3/16] %v230, 128
    %294 = vxpose.xlu0.b32.cont [4/16] %v234, 128
    %295 = vxpose.xlu0.b32.cont [5/16] %v238, 128
    %296 = vxpose.xlu0.b32.cont [6/16] %v242, 128
    %297 = vxpose.xlu0.b32.cont [7/16] %v246, 128
    %298 = vxpose.xlu0.b32.cont [8/16] %v250, 128
    %299 = vxpose.xlu0.b32.cont [9/16] 0.0, 128
    %300 = vxpose.xlu0.b32.cont [10/16] 0.0, 128
    %301 = vxpose.xlu0.b32.cont [11/16] 0.0, 128
    %302 = vxpose.xlu0.b32.cont [12/16] 0.0, 128
    %303 = vxpose.xlu0.b32.cont [13/16] 0.0, 128
    %304 = vxpose.xlu0.b32.cont [14/16] 0.0, 128
    %305 = vxpose.xlu0.b32.cont [15/16] 0.0, 128
    %306 = vxpose.xlu0.b32.end [16/16] 0.0, 128
    %v307 = vpop.trf.xlu0
    %v308 = vpop.trf.xlu0
    %v309 = vpop.trf.xlu0
    %v310 = vpop.trf.xlu0
    %v311 = vpop.trf.xlu0
    %v312 = vpop.trf.xlu0
    %v313 = vpop.trf.xlu0
    %v314 = vpop.trf.xlu0
    %v315 = vpop.trf.xlu0
    %v316 = vpop.trf.xlu0
    %v317 = vpop.trf.xlu0
    %v318 = vpop.trf.xlu0
    %v319 = vpop.trf.xlu0
    %v320 = vpop.trf.xlu0
    %v321 = vpop.trf.xlu0
    %v322 = vpop.trf.xlu0
    %vm323 = vcmask 523264
    %v325 = vsel %vm323, %v275, 0
    %v328 = vsel %vm323, %v276, 0
    %v331 = vsel %vm323, %v277, 0
    %v334 = vsel %vm323, %v278, 0
    %v337 = vsel %vm323, %v279, 0
    %v340 = vsel %vm323, %v280, 0
    %v343 = vsel %vm323, %v281, 0
    %v346 = vsel %vm323, %v282, 0
    %v349 = vsel %vm323, %v283, 0
    %v352 = vsel %vm323, %v284, 0
    %v355 = vsel %vm323, %v285, 0
    %v358 = vsel %vm323, %v286, 0
    %v361 = vsel %vm323, %v287, 0
    %v364 = vsel %vm323, %v288, 0
    %v367 = vsel %vm323, %v289, 0
    %v370 = vsel %vm323, %v290, 0
    %v373 = vsel %vm323, %v307, 0
    %v376 = vsel %vm323, %v308, 0
    %v379 = vsel %vm323, %v309, 0
    %v382 = vsel %vm323, %v310, 0
    %v385 = vsel %vm323, %v311, 0
    %v388 = vsel %vm323, %v312, 0
    %v391 = vsel %vm323, %v313, 0
    %v394 = vsel %vm323, %v314, 0
    %v397 = vsel %vm323, %v315, 0
    %v400 = vsel %vm323, %v316, 0
    %v403 = vsel %vm323, %v317, 0
    %v406 = vsel %vm323, %v318, 0
    %v409 = vsel %vm323, %v319, 0
    %v412 = vsel %vm323, %v320, 0
    %v415 = vsel %vm323, %v321, 0
    %v418 = vsel %vm323, %v322, 0
    %420 = vmatpush.msra.mxu0 0.0
    %421 = vmatpush.msra.mxu0 0.0
    %422 = vmatpush.msra.mxu0 0.0
    %423 = vmatpush.msra.mxu0 0.0
    %424 = vmatpush.msra.mxu0 0.0
    %425 = vmatpush.msra.mxu0 0.0
    %426 = vmatpush.msra.mxu0 0.0
    %427 = vmatpush.msra.mxu0 0.0
    %428 = vmatpush.msra.mxu0 %v258
    %429 = vmatpush.msra.mxu0 %v257
    %430 = vmatpush.msra.mxu0 %v256
    %431 = vmatpush.msra.mxu0 %v255
    %432 = vmatpush.msra.mxu0 %v254
    %433 = vmatpush.msra.mxu0 %v253
    %434 = vmatpush.msra.mxu0 %v252
    %435 = vmatpush.msra.mxu0 %v251
    %436 = vmatmul.f32.gmra.mxu0 %v325
    %v437 = vpop.f32.mrf.mxu0
    %v438 = vadd.f32 0.0, %v437
    %439 = vmatmul.f32.gmra.mxu0 %v328
    %v440 = vpop.f32.mrf.mxu0
    %v441 = vadd.f32 0.0, %v440
    %442 = vmatmul.f32.gmra.mxu0 %v331
    %v443 = vpop.f32.mrf.mxu0
    %v444 = vadd.f32 0.0, %v443
    %445 = vmatmul.f32.gmra.mxu0 %v334
    %v446 = vpop.f32.mrf.mxu0
    %v447 = vadd.f32 0.0, %v446
    %448 = vmatmul.f32.gmra.mxu0 %v337
    %v449 = vpop.f32.mrf.mxu0
    %v450 = vadd.f32 0.0, %v449
    %451 = vmatmul.f32.gmra.mxu0 %v340
    %v452 = vpop.f32.mrf.mxu0
    %v453 = vadd.f32 0.0, %v452
    %454 = vmatmul.f32.gmra.mxu0 %v343
    %v455 = vpop.f32.mrf.mxu0
    %v456 = vadd.f32 0.0, %v455
    %457 = vmatmul.f32.gmra.mxu0 %v346
    %v458 = vpop.f32.mrf.mxu0
    %v459 = vadd.f32 0.0, %v458
    %460 = vmatmul.f32.gmra.mxu0 %v349
    %v461 = vpop.f32.mrf.mxu0
    %v462 = vadd.f32 0.0, %v461
    %463 = vmatmul.f32.gmra.mxu0 %v352
    %v464 = vpop.f32.mrf.mxu0
    %v465 = vadd.f32 0.0, %v464
    %466 = vmatmul.f32.gmra.mxu0 %v355
    %v467 = vpop.f32.mrf.mxu0
    %v468 = vadd.f32 0.0, %v467
    %469 = vmatmul.f32.gmra.mxu0 %v358
    %v470 = vpop.f32.mrf.mxu0
    %v471 = vadd.f32 0.0, %v470
    %472 = vmatmul.f32.gmra.mxu0 %v361
    %v473 = vpop.f32.mrf.mxu0
    %v474 = vadd.f32 0.0, %v473
    %475 = vmatmul.f32.gmra.mxu0 %v364
    %v476 = vpop.f32.mrf.mxu0
    %v477 = vadd.f32 0.0, %v476
    %478 = vmatmul.f32.gmra.mxu0 %v367
    %v479 = vpop.f32.mrf.mxu0
    %v480 = vadd.f32 0.0, %v479
    %481 = vmatmul.f32.gmra.mxu0 %v370
    %v482 = vpop.f32.mrf.mxu0
    %v483 = vadd.f32 0.0, %v482
    %484 = vmatmul.f32.gmra.mxu0 %v373
    %v485 = vpop.f32.mrf.mxu0
    %v486 = vadd.f32 0.0, %v485
    %487 = vmatmul.f32.gmra.mxu0 %v376
    %v488 = vpop.f32.mrf.mxu0
    %v489 = vadd.f32 0.0, %v488
    %490 = vmatmul.f32.gmra.mxu0 %v379
    %v491 = vpop.f32.mrf.mxu0
    %v492 = vadd.f32 0.0, %v491
    %493 = vmatmul.f32.gmra.mxu0 %v382
    %v494 = vpop.f32.mrf.mxu0
    %v495 = vadd.f32 0.0, %v494
    %496 = vmatmul.f32.gmra.mxu0 %v385
    %v497 = vpop.f32.mrf.mxu0
    %v498 = vadd.f32 0.0, %v497
    %499 = vmatmul.f32.gmra.mxu0 %v388
    %v500 = vpop.f32.mrf.mxu0
    %v501 = vadd.f32 0.0, %v500
    %502 = vmatmul.f32.gmra.mxu0 %v391
    %v503 = vpop.f32.mrf.mxu0
    %v504 = vadd.f32 0.0, %v503
    %505 = vmatmul.f32.gmra.mxu0 %v394
    %v506 = vpop.f32.mrf.mxu0
    %v507 = vadd.f32 0.0, %v506
    %508 = vmatmul.f32.gmra.mxu0 %v397
    %v509 = vpop.f32.mrf.mxu0
    %v510 = vadd.f32 0.0, %v509
    %511 = vmatmul.f32.gmra.mxu0 %v400
    %v512 = vpop.f32.mrf.mxu0
    %v513 = vadd.f32 0.0, %v512
    %514 = vmatmul.f32.gmra.mxu0 %v403
    %v515 = vpop.f32.mrf.mxu0
    %v516 = vadd.f32 0.0, %v515
    %517 = vmatmul.f32.gmra.mxu0 %v406
    %v518 = vpop.f32.mrf.mxu0
    %v519 = vadd.f32 0.0, %v518
    %520 = vmatmul.f32.gmra.mxu0 %v409
    %v521 = vpop.f32.mrf.mxu0
    %v522 = vadd.f32 0.0, %v521
    %523 = vmatmul.f32.gmra.mxu0 %v412
    %v524 = vpop.f32.mrf.mxu0
    %v525 = vadd.f32 0.0, %v524
    %526 = vmatmul.f32.gmra.mxu0 %v415
    %v527 = vpop.f32.mrf.mxu0
    %v528 = vadd.f32 0.0, %v527
    %529 = vmatmul.f32.gmra.mxu0 %v418
    %v530 = vpop.f32.mrf.mxu0
    %v531 = vadd.f32 0.0, %v530
    %532 = vdwg.mxu0
    %533 = vst [vmem:[#allocation2] sm:$0xff] %v438
    %534 = vst [vmem:[#allocation2 + $0x8] sm:$0xff] %v441
    %535 = vst [vmem:[#allocation2 + $0x10] sm:$0xff] %v444
    %536 = vst [vmem:[#allocation2 + $0x18] sm:$0xff] %v447
    %537 = vst [vmem:[#allocation2 + $0x20] sm:$0xff] %v450
    %538 = vst [vmem:[#allocation2 + $0x28] sm:$0xff] %v453
    %539 = vst [vmem:[#allocation2 + $0x30] sm:$0xff] %v456
    %540 = vst [vmem:[#allocation2 + $0x38] sm:$0xff] %v459
    %541 = vst [vmem:[#allocation2 + $0x40] sm:$0xff] %v462
    %542 = vst [vmem:[#allocation2 + $0x48] sm:$0xff] %v465
    %543 = vst [vmem:[#allocation2 + $0x50] sm:$0xff] %v468
    %544 = vst [vmem:[#allocation2 + $0x58] sm:$0xff] %v471
    %545 = vst [vmem:[#allocation2 + $0x60] sm:$0xff] %v474
    %546 = vst [vmem:[#allocation2 + $0x68] sm:$0xff] %v477
    %547 = vst [vmem:[#allocation2 + $0x70] sm:$0xff] %v480
    %548 = vst [vmem:[#allocation2 + $0x78] sm:$0xff] %v483
    %549 = vst [vmem:[#allocation2 + $0x80] sm:$0xff] %v486
    %550 = vst [vmem:[#allocation2 + $0x88] sm:$0xff] %v489
    %551 = vst [vmem:[#allocation2 + $0x90] sm:$0xff] %v492
    %552 = vst [vmem:[#allocation2 + $0x98] sm:$0xff] %v495
    %553 = vst [vmem:[#allocation2 + $0xa0] sm:$0xff] %v498
    %554 = vst [vmem:[#allocation2 + $0xa8] sm:$0xff] %v501
    %555 = vst [vmem:[#allocation2 + $0xb0] sm:$0xff] %v504
    %556 = vst [vmem:[#allocation2 + $0xb8] sm:$0xff] %v507
    %557 = vst [vmem:[#allocation2 + $0xc0] sm:$0xff] %v510
    %558 = vst [vmem:[#allocation2 + $0xc8] sm:$0xff] %v513
    %559 = vst [vmem:[#allocation2 + $0xd0] sm:$0xff] %v516
    %560 = vst [vmem:[#allocation2 + $0xd8] sm:$0xff] %v519
    %561 = vst [vmem:[#allocation2 + $0xe0] sm:$0xff] %v522
    %562 = vst [vmem:[#allocation2 + $0xe8] sm:$0xff] %v525
    %563 = vst [vmem:[#allocation2 + $0xf0] sm:$0xff] %v528
    %564 = vst [vmem:[#allocation2 + $0xf8] sm:$0xff] %v531
    // Predicated region
    $region14: #{tpu_custom_call.1} parent=1 // pred_check
      _
    $region15: #{tpu_custom_call.1} parent=1 // pred_check_branch
      %566 = sbr.rel (0) target = $region17
    $region16: #{tpu_custom_call.1} parent=1 // pred_region
      %568 = vsyncadd [#allocation3], 0
      %s569 = sshll.u32 [#allocation2], 4
      %s570 = int_to_ptr.vmem [resolvable:$true] %s569
      %s571 = sshll.u32 %s3, 4
      %s572 = int_to_ptr.hbm [resolvable:$true] %s571
      %577 = dma.vmem_to_hbm [thread:$0]  %s570, 4096, %s572, [#allocation3], 128, 128, 8
    $region17: #{tpu_custom_call.1} parent=1 // pred_fallthru
      _
    // Predicated region
    $region18: #{tpu_custom_call.1} parent=1 // pred_check
      _
    $region19: #{tpu_custom_call.1} parent=1 // pred_check_branch
      %579 = sbr.rel (0) target = $region21
    $region20: #{tpu_custom_call.1} parent=1 // pred_region
      %581 = dma.done [#allocation3], 4096
    $region21: #{tpu_custom_call.1} parent=1 // pred_fallthru
      _
    %582 = vsyncpa [#allocation3], 1

</llo_original>
